<compile_context>
chip_gen: v7x
topology: tpu7x:2x2x1
jax: 0.10.0
libtpu: 0.0.40
codegen_flags: <defaults>
</compile_context>

<pallas_src>
import functools

import jax
import jax.numpy as jnp
from jax.experimental import pallas as pl
from jax.experimental.pallas import tpu as pltpu


def _embed_kernel(ids_ref, wtab_hbm, ptab_ref, out_ref, gather_buf, sems,
                  *, seq_len, t_tile, n_tb):
    # ids_ref:    SMEM (B*T,) int32    -- scalar-prefetched flat token ids
    # wtab_hbm:   HBM  (V, D)          -- word-embedding table (manual gather)
    # ptab_ref:   VMEM (S, D)          -- positional table, grid-resident
    # out_ref:    VMEM (1, t_tile, D)  -- dense output tile
    # gather_buf: VMEM (2*t_tile, D)   -- double-buffered gather scratch
    # sems:       DMA semaphores (2,)  -- one per gather slot
    b = pl.program_id(0)
    tb = pl.program_id(1)
    cur = tb & 1                       # tile j lives in slot j & 1

    def issue_gathers(tile_idx, slot):
        base = b * seq_len + tile_idx * t_tile
        for i in range(t_tile):
            row = ids_ref[base + i]
            pltpu.make_async_copy(wtab_hbm.at[row],
                                  gather_buf.at[slot * t_tile + i],
                                  sems.at[slot]).start()

    # Prime the pipeline on the first tile of every batch row.
    @pl.when(tb == 0)
    def _():
        issue_gathers(0, 0)

    # Prefetch the next tile's word rows into the other slot; their latency is
    # hidden behind this step's wait/add and the pipeline's output writeback.
    @pl.when(tb + 1 < n_tb)
    def _():
        issue_gathers(tb + 1, 1 - cur)

    # Wait for the current tile's gathers (descriptor only sets the expected
    # byte count; all copies signal the shared per-slot semaphore).
    for i in range(t_tile):
        pltpu.make_async_copy(wtab_hbm.at[0],
                              gather_buf.at[cur * t_tile + i],
                              sems.at[cur]).wait()

    word_off = pl.multiple_of(cur * t_tile, t_tile)
    pos_off = pl.multiple_of(tb * t_tile, t_tile)
    out_ref[0] = (gather_buf[pl.ds(word_off, t_tile), :]
                  + ptab_ref[pl.ds(pos_off, t_tile), :])


def pos_and_word_embedding(token_ids, word_table, pos_table, *, t_tile=None):
    """token_ids: (B, T) int; word_table: (V, D); pos_table: (S, D), S >= T."""
    B, T = token_ids.shape
    V, D = word_table.shape
    S, _ = pos_table.shape
    assert T <= S, "sequence length exceeds block_size"

    if t_tile is None:
        t_tile = 8
        for cand in (32, 16, 8):       # amortize per-step + DMA-issue overhead
            if T % cand == 0:
                t_tile = cand
                break
    assert T % t_tile == 0, "T must be a multiple of t_tile"
    assert t_tile % 8 == 0, "t_tile must be sublane-aligned (multiple of 8)"
    n_tb = T // t_tile

    # Flatten ids to 1-D for cheap SMEM storage; clamp defensively so a bad id
    # cannot trigger an out-of-range HBM DMA (PyTorch would raise instead).
    ids_flat = jnp.clip(token_ids.astype(jnp.int32).reshape(-1), 0, V - 1)

    kernel = functools.partial(_embed_kernel, seq_len=T, t_tile=t_tile,
                               n_tb=n_tb)

    grid_spec = pltpu.PrefetchScalarGridSpec(
        num_scalar_prefetch=1,
        grid=(B, n_tb),
        in_specs=[
            # Word table stays in HBM; gathered manually inside the kernel.
            pl.BlockSpec(memory_space=pl.ANY),
            # Positional table resident in VMEM (constant block index ->
            # DMA'd once, never re-fetched per (b, tb)).
            pl.BlockSpec((S, D), lambda b, t, ids: (0, 0)),
        ],
        out_specs=pl.BlockSpec((1, t_tile, D), lambda b, t, ids: (b, t, 0)),
        scratch_shapes=[
            pltpu.VMEM((2 * t_tile, D), word_table.dtype),
            pltpu.SemaphoreType.DMA((2,)),
        ],
    )

    return pl.pallas_call(
        kernel,
        out_shape=jax.ShapeDtypeStruct((B, T, D), word_table.dtype),
        grid_spec=grid_spec,
        compiler_params=pltpu.CompilerParams(
            # b independent across cores; tb carries the gather double-buffer.
            dimension_semantics=("parallel", "arbitrary"),
        ),
    )(ids_flat, word_table, pos_table)


if __name__ == "__main__":
    # Small, deterministic config consistent with the module's __init__.
    vocab_size = 32    # config.vocab_size
    block_size = 16    # config.block_size
    embd_dim = 128     # config.embd_dim (lane-dense: multiple of 128)
    B, T = 2, 16       # batch, seq (T <= block_size, multiple of t_tile)

    key = jax.random.PRNGKey(0)
    k_ids, k_w, k_p = jax.random.split(key, 3)

    token_ids = jax.random.randint(k_ids, (B, T), 0, vocab_size, dtype=jnp.int32)
    # nn.Embedding weights ~ N(0, 1) by default.
    word_table = jax.random.normal(k_w, (vocab_size, embd_dim), dtype=jnp.float32)
    pos_table = jax.random.normal(k_p, (block_size, embd_dim), dtype=jnp.float32)

    # t_tile=8 -> 2 tiles per batch row, exercising the prime + prefetch path.
    out = pos_and_word_embedding(token_ids, word_table, pos_table, t_tile=8)
    out = jax.block_until_ready(out)

    # Pure-JAX reference check (eval-mode dropout == identity).
    ref = word_table[token_ids] + pos_table[jnp.arange(T)][None, :, :]
    assert out.shape == (B, T, embd_dim)
    assert jnp.allclose(out, ref, atol=1e-6), "mismatch vs reference"

    print("KERNEL_OK")
</pallas_src>

<mosaic_0001>
module attributes {stable_mosaic.version = 11 : i64} {
  func.func @_embed_kernel(%arg0: i32, %arg1: i32, %arg2: memref<32xi32, #tpu.memory_space<smem>>, %arg3: memref<32x128xf32, #tpu.memory_space<any>>, %arg4: memref<16x128xf32, #tpu.memory_space<vmem>>, %arg5: memref<1x8x128xf32, #tpu.memory_space<vmem>>, %arg6: memref<16x128xf32, #tpu.memory_space<vmem>>, %arg7: memref<2x!tpu.dma_semaphore, #tpu.memory_space<semaphore_mem>>) attributes {dimension_semantics = [#tpu.dimension_semantics<parallel>, #tpu.dimension_semantics<arbitrary>], iteration_bounds = array<i64: 2, 2>, scalar_prefetch = 1 : i64, scratch_operands = 2 : i64, tpu.core_type = #tpu.core_type<tc>, window_params = [{}, {pipeline_mode = #tpu.pipeline_mode<synchronous>, transform_indices = @transform_1, window_bounds = array<i64: 16, 128>}, {transform_indices = @transform_2, window_bounds = array<i64: 1, 8, 128>}]} {
    %c1_i32 = arith.constant 1 : i32
    %0 = arith.andi %arg1, %c1_i32 : i32
    %c0_i32 = arith.constant 0 : i32
    %1 = arith.cmpi eq, %arg1, %c0_i32 : i32
    %2 = arith.extui %1 : i1 to i32
    %c0_i32_0 = arith.constant 0 : i32
    %3 = arith.cmpi ne, %2, %c0_i32_0 : i32
    scf.if %3 {
      %c16_i32 = arith.constant 16 : i32
      %84 = arith.muli %arg0, %c16_i32 : i32
      %c0_i32_43 = arith.constant 0 : i32
      %85 = arith.addi %84, %c0_i32_43 : i32
      %c0_i32_44 = arith.constant 0 : i32
      %86 = arith.addi %85, %c0_i32_44 : i32
      %87 = arith.index_cast %86 : i32 to index
      %88 = memref.load %arg2[%87] : memref<32xi32, #tpu.memory_space<smem>>
      %c0_i32_45 = arith.constant 0 : i32
      %c0_i32_46 = arith.constant 0 : i32
      %c0_i32_47 = arith.constant 0 : i32
      %89 = tpu.memref_slice %arg3[%88, %c0_i32_47] : memref<32x128xf32, #tpu.memory_space<any>> -> memref<1x128xf32, #tpu.memory_space<any>>
      %90 = tpu.memref_squeeze %89 : memref<1x128xf32, #tpu.memory_space<any>> -> memref<128xf32, #tpu.memory_space<any>>
      %c0_i32_48 = arith.constant 0 : i32
      %91 = tpu.memref_slice %arg6[%c0_i32_45, %c0_i32_48] : memref<16x128xf32, #tpu.memory_space<vmem>> -> memref<1x128xf32, #tpu.memory_space<vmem>>
      %92 = tpu.memref_squeeze %91 : memref<1x128xf32, #tpu.memory_space<vmem>> -> memref<128xf32, #tpu.memory_space<vmem>>
      %93 = tpu.memref_slice %arg7[%c0_i32_46] : memref<2x!tpu.dma_semaphore, #tpu.memory_space<semaphore_mem>> -> memref<1x!tpu.dma_semaphore, #tpu.memory_space<semaphore_mem>>
      %94 = tpu.memref_squeeze %93 : memref<1x!tpu.dma_semaphore, #tpu.memory_space<semaphore_mem>> -> memref<!tpu.dma_semaphore, #tpu.memory_space<semaphore_mem>>
      tpu.enqueue_dma source(%90 : memref<128xf32, #tpu.memory_space<any>>) target(%92 : memref<128xf32, #tpu.memory_space<vmem>>) target_semaphore(%94 : memref<!tpu.dma_semaphore, #tpu.memory_space<semaphore_mem>>)
      %c1_i32_49 = arith.constant 1 : i32
      %95 = arith.addi %85, %c1_i32_49 : i32
      %96 = arith.index_cast %95 : i32 to index
      %97 = memref.load %arg2[%96] : memref<32xi32, #tpu.memory_space<smem>>
      %c1_i32_50 = arith.constant 1 : i32
      %c0_i32_51 = arith.constant 0 : i32
      %c0_i32_52 = arith.constant 0 : i32
      %98 = tpu.memref_slice %arg3[%97, %c0_i32_52] : memref<32x128xf32, #tpu.memory_space<any>> -> memref<1x128xf32, #tpu.memory_space<any>>
      %99 = tpu.memref_squeeze %98 : memref<1x128xf32, #tpu.memory_space<any>> -> memref<128xf32, #tpu.memory_space<any>>
      %c0_i32_53 = arith.constant 0 : i32
      %100 = tpu.memref_slice %arg6[%c1_i32_50, %c0_i32_53] : memref<16x128xf32, #tpu.memory_space<vmem>> -> memref<1x128xf32, #tpu.memory_space<vmem>>
      %101 = tpu.memref_squeeze %100 : memref<1x128xf32, #tpu.memory_space<vmem>> -> memref<128xf32, #tpu.memory_space<vmem>>
      %102 = tpu.memref_slice %arg7[%c0_i32_51] : memref<2x!tpu.dma_semaphore, #tpu.memory_space<semaphore_mem>> -> memref<1x!tpu.dma_semaphore, #tpu.memory_space<semaphore_mem>>
      %103 = tpu.memref_squeeze %102 : memref<1x!tpu.dma_semaphore, #tpu.memory_space<semaphore_mem>> -> memref<!tpu.dma_semaphore, #tpu.memory_space<semaphore_mem>>
      tpu.enqueue_dma source(%99 : memref<128xf32, #tpu.memory_space<any>>) target(%101 : memref<128xf32, #tpu.memory_space<vmem>>) target_semaphore(%103 : memref<!tpu.dma_semaphore, #tpu.memory_space<semaphore_mem>>)
      %c2_i32_54 = arith.constant 2 : i32
      %104 = arith.addi %85, %c2_i32_54 : i32
      %105 = arith.index_cast %104 : i32 to index
      %106 = memref.load %arg2[%105] : memref<32xi32, #tpu.memory_space<smem>>
      %c2_i32_55 = arith.constant 2 : i32
      %c0_i32_56 = arith.constant 0 : i32
      %c0_i32_57 = arith.constant 0 : i32
      %107 = tpu.memref_slice %arg3[%106, %c0_i32_57] : memref<32x128xf32, #tpu.memory_space<any>> -> memref<1x128xf32, #tpu.memory_space<any>>
      %108 = tpu.memref_squeeze %107 : memref<1x128xf32, #tpu.memory_space<any>> -> memref<128xf32, #tpu.memory_space<any>>
      %c0_i32_58 = arith.constant 0 : i32
      %109 = tpu.memref_slice %arg6[%c2_i32_55, %c0_i32_58] : memref<16x128xf32, #tpu.memory_space<vmem>> -> memref<1x128xf32, #tpu.memory_space<vmem>>
      %110 = tpu.memref_squeeze %109 : memref<1x128xf32, #tpu.memory_space<vmem>> -> memref<128xf32, #tpu.memory_space<vmem>>
      %111 = tpu.memref_slice %arg7[%c0_i32_56] : memref<2x!tpu.dma_semaphore, #tpu.memory_space<semaphore_mem>> -> memref<1x!tpu.dma_semaphore, #tpu.memory_space<semaphore_mem>>
      %112 = tpu.memref_squeeze %111 : memref<1x!tpu.dma_semaphore, #tpu.memory_space<semaphore_mem>> -> memref<!tpu.dma_semaphore, #tpu.memory_space<semaphore_mem>>
      tpu.enqueue_dma source(%108 : memref<128xf32, #tpu.memory_space<any>>) target(%110 : memref<128xf32, #tpu.memory_space<vmem>>) target_semaphore(%112 : memref<!tpu.dma_semaphore, #tpu.memory_space<semaphore_mem>>)
      %c3_i32_59 = arith.constant 3 : i32
      %113 = arith.addi %85, %c3_i32_59 : i32
      %114 = arith.index_cast %113 : i32 to index
      %115 = memref.load %arg2[%114] : memref<32xi32, #tpu.memory_space<smem>>
      %c3_i32_60 = arith.constant 3 : i32
      %c0_i32_61 = arith.constant 0 : i32
      %c0_i32_62 = arith.constant 0 : i32
      %116 = tpu.memref_slice %arg3[%115, %c0_i32_62] : memref<32x128xf32, #tpu.memory_space<any>> -> memref<1x128xf32, #tpu.memory_space<any>>
      %117 = tpu.memref_squeeze %116 : memref<1x128xf32, #tpu.memory_space<any>> -> memref<128xf32, #tpu.memory_space<any>>
      %c0_i32_63 = arith.constant 0 : i32
      %118 = tpu.memref_slice %arg6[%c3_i32_60, %c0_i32_63] : memref<16x128xf32, #tpu.memory_space<vmem>> -> memref<1x128xf32, #tpu.memory_space<vmem>>
      %119 = tpu.memref_squeeze %118 : memref<1x128xf32, #tpu.memory_space<vmem>> -> memref<128xf32, #tpu.memory_space<vmem>>
      %120 = tpu.memref_slice %arg7[%c0_i32_61] : memref<2x!tpu.dma_semaphore, #tpu.memory_space<semaphore_mem>> -> memref<1x!tpu.dma_semaphore, #tpu.memory_space<semaphore_mem>>
      %121 = tpu.memref_squeeze %120 : memref<1x!tpu.dma_semaphore, #tpu.memory_space<semaphore_mem>> -> memref<!tpu.dma_semaphore, #tpu.memory_space<semaphore_mem>>
      tpu.enqueue_dma source(%117 : memref<128xf32, #tpu.memory_space<any>>) target(%119 : memref<128xf32, #tpu.memory_space<vmem>>) target_semaphore(%121 : memref<!tpu.dma_semaphore, #tpu.memory_space<semaphore_mem>>)
      %c4_i32_64 = arith.constant 4 : i32
      %122 = arith.addi %85, %c4_i32_64 : i32
      %123 = arith.index_cast %122 : i32 to index
      %124 = memref.load %arg2[%123] : memref<32xi32, #tpu.memory_space<smem>>
      %c4_i32_65 = arith.constant 4 : i32
      %c0_i32_66 = arith.constant 0 : i32
      %c0_i32_67 = arith.constant 0 : i32
      %125 = tpu.memref_slice %arg3[%124, %c0_i32_67] : memref<32x128xf32, #tpu.memory_space<any>> -> memref<1x128xf32, #tpu.memory_space<any>>
      %126 = tpu.memref_squeeze %125 : memref<1x128xf32, #tpu.memory_space<any>> -> memref<128xf32, #tpu.memory_space<any>>
      %c0_i32_68 = arith.constant 0 : i32
      %127 = tpu.memref_slice %arg6[%c4_i32_65, %c0_i32_68] : memref<16x128xf32, #tpu.memory_space<vmem>> -> memref<1x128xf32, #tpu.memory_space<vmem>>
      %128 = tpu.memref_squeeze %127 : memref<1x128xf32, #tpu.memory_space<vmem>> -> memref<128xf32, #tpu.memory_space<vmem>>
      %129 = tpu.memref_slice %arg7[%c0_i32_66] : memref<2x!tpu.dma_semaphore, #tpu.memory_space<semaphore_mem>> -> memref<1x!tpu.dma_semaphore, #tpu.memory_space<semaphore_mem>>
      %130 = tpu.memref_squeeze %129 : memref<1x!tpu.dma_semaphore, #tpu.memory_space<semaphore_mem>> -> memref<!tpu.dma_semaphore, #tpu.memory_space<semaphore_mem>>
      tpu.enqueue_dma source(%126 : memref<128xf32, #tpu.memory_space<any>>) target(%128 : memref<128xf32, #tpu.memory_space<vmem>>) target_semaphore(%130 : memref<!tpu.dma_semaphore, #tpu.memory_space<semaphore_mem>>)
      %c5_i32_69 = arith.constant 5 : i32
      %131 = arith.addi %85, %c5_i32_69 : i32
      %132 = arith.index_cast %131 : i32 to index
      %133 = memref.load %arg2[%132] : memref<32xi32, #tpu.memory_space<smem>>
      %c5_i32_70 = arith.constant 5 : i32
      %c0_i32_71 = arith.constant 0 : i32
      %c0_i32_72 = arith.constant 0 : i32
      %134 = tpu.memref_slice %arg3[%133, %c0_i32_72] : memref<32x128xf32, #tpu.memory_space<any>> -> memref<1x128xf32, #tpu.memory_space<any>>
      %135 = tpu.memref_squeeze %134 : memref<1x128xf32, #tpu.memory_space<any>> -> memref<128xf32, #tpu.memory_space<any>>
      %c0_i32_73 = arith.constant 0 : i32
      %136 = tpu.memref_slice %arg6[%c5_i32_70, %c0_i32_73] : memref<16x128xf32, #tpu.memory_space<vmem>> -> memref<1x128xf32, #tpu.memory_space<vmem>>
      %137 = tpu.memref_squeeze %136 : memref<1x128xf32, #tpu.memory_space<vmem>> -> memref<128xf32, #tpu.memory_space<vmem>>
      %138 = tpu.memref_slice %arg7[%c0_i32_71] : memref<2x!tpu.dma_semaphore, #tpu.memory_space<semaphore_mem>> -> memref<1x!tpu.dma_semaphore, #tpu.memory_space<semaphore_mem>>
      %139 = tpu.memref_squeeze %138 : memref<1x!tpu.dma_semaphore, #tpu.memory_space<semaphore_mem>> -> memref<!tpu.dma_semaphore, #tpu.memory_space<semaphore_mem>>
      tpu.enqueue_dma source(%135 : memref<128xf32, #tpu.memory_space<any>>) target(%137 : memref<128xf32, #tpu.memory_space<vmem>>) target_semaphore(%139 : memref<!tpu.dma_semaphore, #tpu.memory_space<semaphore_mem>>)
      %c6_i32_74 = arith.constant 6 : i32
      %140 = arith.addi %85, %c6_i32_74 : i32
      %141 = arith.index_cast %140 : i32 to index
      %142 = memref.load %arg2[%141] : memref<32xi32, #tpu.memory_space<smem>>
      %c6_i32_75 = arith.constant 6 : i32
      %c0_i32_76 = arith.constant 0 : i32
      %c0_i32_77 = arith.constant 0 : i32
      %143 = tpu.memref_slice %arg3[%142, %c0_i32_77] : memref<32x128xf32, #tpu.memory_space<any>> -> memref<1x128xf32, #tpu.memory_space<any>>
      %144 = tpu.memref_squeeze %143 : memref<1x128xf32, #tpu.memory_space<any>> -> memref<128xf32, #tpu.memory_space<any>>
      %c0_i32_78 = arith.constant 0 : i32
      %145 = tpu.memref_slice %arg6[%c6_i32_75, %c0_i32_78] : memref<16x128xf32, #tpu.memory_space<vmem>> -> memref<1x128xf32, #tpu.memory_space<vmem>>
      %146 = tpu.memref_squeeze %145 : memref<1x128xf32, #tpu.memory_space<vmem>> -> memref<128xf32, #tpu.memory_space<vmem>>
      %147 = tpu.memref_slice %arg7[%c0_i32_76] : memref<2x!tpu.dma_semaphore, #tpu.memory_space<semaphore_mem>> -> memref<1x!tpu.dma_semaphore, #tpu.memory_space<semaphore_mem>>
      %148 = tpu.memref_squeeze %147 : memref<1x!tpu.dma_semaphore, #tpu.memory_space<semaphore_mem>> -> memref<!tpu.dma_semaphore, #tpu.memory_space<semaphore_mem>>
      tpu.enqueue_dma source(%144 : memref<128xf32, #tpu.memory_space<any>>) target(%146 : memref<128xf32, #tpu.memory_space<vmem>>) target_semaphore(%148 : memref<!tpu.dma_semaphore, #tpu.memory_space<semaphore_mem>>)
      %c7_i32_79 = arith.constant 7 : i32
      %149 = arith.addi %85, %c7_i32_79 : i32
      %150 = arith.index_cast %149 : i32 to index
      %151 = memref.load %arg2[%150] : memref<32xi32, #tpu.memory_space<smem>>
      %c7_i32_80 = arith.constant 7 : i32
      %c0_i32_81 = arith.constant 0 : i32
      %c0_i32_82 = arith.constant 0 : i32
      %152 = tpu.memref_slice %arg3[%151, %c0_i32_82] : memref<32x128xf32, #tpu.memory_space<any>> -> memref<1x128xf32, #tpu.memory_space<any>>
      %153 = tpu.memref_squeeze %152 : memref<1x128xf32, #tpu.memory_space<any>> -> memref<128xf32, #tpu.memory_space<any>>
      %c0_i32_83 = arith.constant 0 : i32
      %154 = tpu.memref_slice %arg6[%c7_i32_80, %c0_i32_83] : memref<16x128xf32, #tpu.memory_space<vmem>> -> memref<1x128xf32, #tpu.memory_space<vmem>>
      %155 = tpu.memref_squeeze %154 : memref<1x128xf32, #tpu.memory_space<vmem>> -> memref<128xf32, #tpu.memory_space<vmem>>
      %156 = tpu.memref_slice %arg7[%c0_i32_81] : memref<2x!tpu.dma_semaphore, #tpu.memory_space<semaphore_mem>> -> memref<1x!tpu.dma_semaphore, #tpu.memory_space<semaphore_mem>>
      %157 = tpu.memref_squeeze %156 : memref<1x!tpu.dma_semaphore, #tpu.memory_space<semaphore_mem>> -> memref<!tpu.dma_semaphore, #tpu.memory_space<semaphore_mem>>
      tpu.enqueue_dma source(%153 : memref<128xf32, #tpu.memory_space<any>>) target(%155 : memref<128xf32, #tpu.memory_space<vmem>>) target_semaphore(%157 : memref<!tpu.dma_semaphore, #tpu.memory_space<semaphore_mem>>)
    } else {
    }
    %c1_i32_1 = arith.constant 1 : i32
    %4 = arith.addi %arg1, %c1_i32_1 : i32
    %c2_i32 = arith.constant 2 : i32
    %5 = arith.cmpi slt, %4, %c2_i32 : i32
    %6 = arith.extui %5 : i1 to i32
    %c0_i32_2 = arith.constant 0 : i32
    %7 = arith.cmpi ne, %6, %c0_i32_2 : i32
    scf.if %7 {
      %c1_i32_43 = arith.constant 1 : i32
      %84 = arith.addi %arg1, %c1_i32_43 : i32
      %c1_i32_44 = arith.constant 1 : i32
      %85 = arith.subi %c1_i32_44, %0 : i32
      %c16_i32 = arith.constant 16 : i32
      %86 = arith.muli %arg0, %c16_i32 : i32
      %c8_i32_45 = arith.constant 8 : i32
      %87 = arith.muli %84, %c8_i32_45 : i32
      %88 = arith.addi %86, %87 : i32
      %c0_i32_46 = arith.constant 0 : i32
      %89 = arith.addi %88, %c0_i32_46 : i32
      %90 = arith.index_cast %89 : i32 to index
      %91 = memref.load %arg2[%90] : memref<32xi32, #tpu.memory_space<smem>>
      %c8_i32_47 = arith.constant 8 : i32
      %92 = arith.muli %85, %c8_i32_47 : i32
      %c0_i32_48 = arith.constant 0 : i32
      %93 = arith.addi %92, %c0_i32_48 : i32
      %c0_i32_49 = arith.constant 0 : i32
      %94 = tpu.memref_slice %arg3[%91, %c0_i32_49] : memref<32x128xf32, #tpu.memory_space<any>> -> memref<1x128xf32, #tpu.memory_space<any>>
      %95 = tpu.memref_squeeze %94 : memref<1x128xf32, #tpu.memory_space<any>> -> memref<128xf32, #tpu.memory_space<any>>
      %c0_i32_50 = arith.constant 0 : i32
      %96 = tpu.memref_slice %arg6[%93, %c0_i32_50] : memref<16x128xf32, #tpu.memory_space<vmem>> -> memref<1x128xf32, #tpu.memory_space<vmem>>
      %97 = tpu.memref_squeeze %96 : memref<1x128xf32, #tpu.memory_space<vmem>> -> memref<128xf32, #tpu.memory_space<vmem>>
      %98 = tpu.memref_slice %arg7[%85] : memref<2x!tpu.dma_semaphore, #tpu.memory_space<semaphore_mem>> -> memref<1x!tpu.dma_semaphore, #tpu.memory_space<semaphore_mem>>
      %99 = tpu.memref_squeeze %98 : memref<1x!tpu.dma_semaphore, #tpu.memory_space<semaphore_mem>> -> memref<!tpu.dma_semaphore, #tpu.memory_space<semaphore_mem>>
      tpu.enqueue_dma source(%95 : memref<128xf32, #tpu.memory_space<any>>) target(%97 : memref<128xf32, #tpu.memory_space<vmem>>) target_semaphore(%99 : memref<!tpu.dma_semaphore, #tpu.memory_space<semaphore_mem>>)
      %c1_i32_51 = arith.constant 1 : i32
      %100 = arith.addi %88, %c1_i32_51 : i32
      %101 = arith.index_cast %100 : i32 to index
      %102 = memref.load %arg2[%101] : memref<32xi32, #tpu.memory_space<smem>>
      %c8_i32_52 = arith.constant 8 : i32
      %103 = arith.muli %85, %c8_i32_52 : i32
      %c1_i32_53 = arith.constant 1 : i32
      %104 = arith.addi %103, %c1_i32_53 : i32
      %c0_i32_54 = arith.constant 0 : i32
      %105 = tpu.memref_slice %arg3[%102, %c0_i32_54] : memref<32x128xf32, #tpu.memory_space<any>> -> memref<1x128xf32, #tpu.memory_space<any>>
      %106 = tpu.memref_squeeze %105 : memref<1x128xf32, #tpu.memory_space<any>> -> memref<128xf32, #tpu.memory_space<any>>
      %c0_i32_55 = arith.constant 0 : i32
      %107 = tpu.memref_slice %arg6[%104, %c0_i32_55] : memref<16x128xf32, #tpu.memory_space<vmem>> -> memref<1x128xf32, #tpu.memory_space<vmem>>
      %108 = tpu.memref_squeeze %107 : memref<1x128xf32, #tpu.memory_space<vmem>> -> memref<128xf32, #tpu.memory_space<vmem>>
      %109 = tpu.memref_slice %arg7[%85] : memref<2x!tpu.dma_semaphore, #tpu.memory_space<semaphore_mem>> -> memref<1x!tpu.dma_semaphore, #tpu.memory_space<semaphore_mem>>
      %110 = tpu.memref_squeeze %109 : memref<1x!tpu.dma_semaphore, #tpu.memory_space<semaphore_mem>> -> memref<!tpu.dma_semaphore, #tpu.memory_space<semaphore_mem>>
      tpu.enqueue_dma source(%106 : memref<128xf32, #tpu.memory_space<any>>) target(%108 : memref<128xf32, #tpu.memory_space<vmem>>) target_semaphore(%110 : memref<!tpu.dma_semaphore, #tpu.memory_space<semaphore_mem>>)
      %c2_i32_56 = arith.constant 2 : i32
      %111 = arith.addi %88, %c2_i32_56 : i32
      %112 = arith.index_cast %111 : i32 to index
      %113 = memref.load %arg2[%112] : memref<32xi32, #tpu.memory_space<smem>>
      %c8_i32_57 = arith.constant 8 : i32
      %114 = arith.muli %85, %c8_i32_57 : i32
      %c2_i32_58 = arith.constant 2 : i32
      %115 = arith.addi %114, %c2_i32_58 : i32
      %c0_i32_59 = arith.constant 0 : i32
      %116 = tpu.memref_slice %arg3[%113, %c0_i32_59] : memref<32x128xf32, #tpu.memory_space<any>> -> memref<1x128xf32, #tpu.memory_space<any>>
      %117 = tpu.memref_squeeze %116 : memref<1x128xf32, #tpu.memory_space<any>> -> memref<128xf32, #tpu.memory_space<any>>
      %c0_i32_60 = arith.constant 0 : i32
      %118 = tpu.memref_slice %arg6[%115, %c0_i32_60] : memref<16x128xf32, #tpu.memory_space<vmem>> -> memref<1x128xf32, #tpu.memory_space<vmem>>
      %119 = tpu.memref_squeeze %118 : memref<1x128xf32, #tpu.memory_space<vmem>> -> memref<128xf32, #tpu.memory_space<vmem>>
      %120 = tpu.memref_slice %arg7[%85] : memref<2x!tpu.dma_semaphore, #tpu.memory_space<semaphore_mem>> -> memref<1x!tpu.dma_semaphore, #tpu.memory_space<semaphore_mem>>
      %121 = tpu.memref_squeeze %120 : memref<1x!tpu.dma_semaphore, #tpu.memory_space<semaphore_mem>> -> memref<!tpu.dma_semaphore, #tpu.memory_space<semaphore_mem>>
      tpu.enqueue_dma source(%117 : memref<128xf32, #tpu.memory_space<any>>) target(%119 : memref<128xf32, #tpu.memory_space<vmem>>) target_semaphore(%121 : memref<!tpu.dma_semaphore, #tpu.memory_space<semaphore_mem>>)
      %c3_i32_61 = arith.constant 3 : i32
      %122 = arith.addi %88, %c3_i32_61 : i32
      %123 = arith.index_cast %122 : i32 to index
      %124 = memref.load %arg2[%123] : memref<32xi32, #tpu.memory_space<smem>>
      %c8_i32_62 = arith.constant 8 : i32
      %125 = arith.muli %85, %c8_i32_62 : i32
      %c3_i32_63 = arith.constant 3 : i32
      %126 = arith.addi %125, %c3_i32_63 : i32
      %c0_i32_64 = arith.constant 0 : i32
      %127 = tpu.memref_slice %arg3[%124, %c0_i32_64] : memref<32x128xf32, #tpu.memory_space<any>> -> memref<1x128xf32, #tpu.memory_space<any>>
      %128 = tpu.memref_squeeze %127 : memref<1x128xf32, #tpu.memory_space<any>> -> memref<128xf32, #tpu.memory_space<any>>
      %c0_i32_65 = arith.constant 0 : i32
      %129 = tpu.memref_slice %arg6[%126, %c0_i32_65] : memref<16x128xf32, #tpu.memory_space<vmem>> -> memref<1x128xf32, #tpu.memory_space<vmem>>
      %130 = tpu.memref_squeeze %129 : memref<1x128xf32, #tpu.memory_space<vmem>> -> memref<128xf32, #tpu.memory_space<vmem>>
      %131 = tpu.memref_slice %arg7[%85] : memref<2x!tpu.dma_semaphore, #tpu.memory_space<semaphore_mem>> -> memref<1x!tpu.dma_semaphore, #tpu.memory_space<semaphore_mem>>
      %132 = tpu.memref_squeeze %131 : memref<1x!tpu.dma_semaphore, #tpu.memory_space<semaphore_mem>> -> memref<!tpu.dma_semaphore, #tpu.memory_space<semaphore_mem>>
      tpu.enqueue_dma source(%128 : memref<128xf32, #tpu.memory_space<any>>) target(%130 : memref<128xf32, #tpu.memory_space<vmem>>) target_semaphore(%132 : memref<!tpu.dma_semaphore, #tpu.memory_space<semaphore_mem>>)
      %c4_i32_66 = arith.constant 4 : i32
      %133 = arith.addi %88, %c4_i32_66 : i32
      %134 = arith.index_cast %133 : i32 to index
      %135 = memref.load %arg2[%134] : memref<32xi32, #tpu.memory_space<smem>>
      %c8_i32_67 = arith.constant 8 : i32
      %136 = arith.muli %85, %c8_i32_67 : i32
      %c4_i32_68 = arith.constant 4 : i32
      %137 = arith.addi %136, %c4_i32_68 : i32
      %c0_i32_69 = arith.constant 0 : i32
      %138 = tpu.memref_slice %arg3[%135, %c0_i32_69] : memref<32x128xf32, #tpu.memory_space<any>> -> memref<1x128xf32, #tpu.memory_space<any>>
      %139 = tpu.memref_squeeze %138 : memref<1x128xf32, #tpu.memory_space<any>> -> memref<128xf32, #tpu.memory_space<any>>
      %c0_i32_70 = arith.constant 0 : i32
      %140 = tpu.memref_slice %arg6[%137, %c0_i32_70] : memref<16x128xf32, #tpu.memory_space<vmem>> -> memref<1x128xf32, #tpu.memory_space<vmem>>
      %141 = tpu.memref_squeeze %140 : memref<1x128xf32, #tpu.memory_space<vmem>> -> memref<128xf32, #tpu.memory_space<vmem>>
      %142 = tpu.memref_slice %arg7[%85] : memref<2x!tpu.dma_semaphore, #tpu.memory_space<semaphore_mem>> -> memref<1x!tpu.dma_semaphore, #tpu.memory_space<semaphore_mem>>
      %143 = tpu.memref_squeeze %142 : memref<1x!tpu.dma_semaphore, #tpu.memory_space<semaphore_mem>> -> memref<!tpu.dma_semaphore, #tpu.memory_space<semaphore_mem>>
      tpu.enqueue_dma source(%139 : memref<128xf32, #tpu.memory_space<any>>) target(%141 : memref<128xf32, #tpu.memory_space<vmem>>) target_semaphore(%143 : memref<!tpu.dma_semaphore, #tpu.memory_space<semaphore_mem>>)
      %c5_i32_71 = arith.constant 5 : i32
      %144 = arith.addi %88, %c5_i32_71 : i32
      %145 = arith.index_cast %144 : i32 to index
      %146 = memref.load %arg2[%145] : memref<32xi32, #tpu.memory_space<smem>>
      %c8_i32_72 = arith.constant 8 : i32
      %147 = arith.muli %85, %c8_i32_72 : i32
      %c5_i32_73 = arith.constant 5 : i32
      %148 = arith.addi %147, %c5_i32_73 : i32
      %c0_i32_74 = arith.constant 0 : i32
      %149 = tpu.memref_slice %arg3[%146, %c0_i32_74] : memref<32x128xf32, #tpu.memory_space<any>> -> memref<1x128xf32, #tpu.memory_space<any>>
      %150 = tpu.memref_squeeze %149 : memref<1x128xf32, #tpu.memory_space<any>> -> memref<128xf32, #tpu.memory_space<any>>
      %c0_i32_75 = arith.constant 0 : i32
      %151 = tpu.memref_slice %arg6[%148, %c0_i32_75] : memref<16x128xf32, #tpu.memory_space<vmem>> -> memref<1x128xf32, #tpu.memory_space<vmem>>
      %152 = tpu.memref_squeeze %151 : memref<1x128xf32, #tpu.memory_space<vmem>> -> memref<128xf32, #tpu.memory_space<vmem>>
      %153 = tpu.memref_slice %arg7[%85] : memref<2x!tpu.dma_semaphore, #tpu.memory_space<semaphore_mem>> -> memref<1x!tpu.dma_semaphore, #tpu.memory_space<semaphore_mem>>
      %154 = tpu.memref_squeeze %153 : memref<1x!tpu.dma_semaphore, #tpu.memory_space<semaphore_mem>> -> memref<!tpu.dma_semaphore, #tpu.memory_space<semaphore_mem>>
      tpu.enqueue_dma source(%150 : memref<128xf32, #tpu.memory_space<any>>) target(%152 : memref<128xf32, #tpu.memory_space<vmem>>) target_semaphore(%154 : memref<!tpu.dma_semaphore, #tpu.memory_space<semaphore_mem>>)
      %c6_i32_76 = arith.constant 6 : i32
      %155 = arith.addi %88, %c6_i32_76 : i32
      %156 = arith.index_cast %155 : i32 to index
      %157 = memref.load %arg2[%156] : memref<32xi32, #tpu.memory_space<smem>>
      %c8_i32_77 = arith.constant 8 : i32
      %158 = arith.muli %85, %c8_i32_77 : i32
      %c6_i32_78 = arith.constant 6 : i32
      %159 = arith.addi %158, %c6_i32_78 : i32
      %c0_i32_79 = arith.constant 0 : i32
      %160 = tpu.memref_slice %arg3[%157, %c0_i32_79] : memref<32x128xf32, #tpu.memory_space<any>> -> memref<1x128xf32, #tpu.memory_space<any>>
      %161 = tpu.memref_squeeze %160 : memref<1x128xf32, #tpu.memory_space<any>> -> memref<128xf32, #tpu.memory_space<any>>
      %c0_i32_80 = arith.constant 0 : i32
      %162 = tpu.memref_slice %arg6[%159, %c0_i32_80] : memref<16x128xf32, #tpu.memory_space<vmem>> -> memref<1x128xf32, #tpu.memory_space<vmem>>
      %163 = tpu.memref_squeeze %162 : memref<1x128xf32, #tpu.memory_space<vmem>> -> memref<128xf32, #tpu.memory_space<vmem>>
      %164 = tpu.memref_slice %arg7[%85] : memref<2x!tpu.dma_semaphore, #tpu.memory_space<semaphore_mem>> -> memref<1x!tpu.dma_semaphore, #tpu.memory_space<semaphore_mem>>
      %165 = tpu.memref_squeeze %164 : memref<1x!tpu.dma_semaphore, #tpu.memory_space<semaphore_mem>> -> memref<!tpu.dma_semaphore, #tpu.memory_space<semaphore_mem>>
      tpu.enqueue_dma source(%161 : memref<128xf32, #tpu.memory_space<any>>) target(%163 : memref<128xf32, #tpu.memory_space<vmem>>) target_semaphore(%165 : memref<!tpu.dma_semaphore, #tpu.memory_space<semaphore_mem>>)
      %c7_i32_81 = arith.constant 7 : i32
      %166 = arith.addi %88, %c7_i32_81 : i32
      %167 = arith.index_cast %166 : i32 to index
      %168 = memref.load %arg2[%167] : memref<32xi32, #tpu.memory_space<smem>>
      %c8_i32_82 = arith.constant 8 : i32
      %169 = arith.muli %85, %c8_i32_82 : i32
      %c7_i32_83 = arith.constant 7 : i32
      %170 = arith.addi %169, %c7_i32_83 : i32
      %c0_i32_84 = arith.constant 0 : i32
      %171 = tpu.memref_slice %arg3[%168, %c0_i32_84] : memref<32x128xf32, #tpu.memory_space<any>> -> memref<1x128xf32, #tpu.memory_space<any>>
      %172 = tpu.memref_squeeze %171 : memref<1x128xf32, #tpu.memory_space<any>> -> memref<128xf32, #tpu.memory_space<any>>
      %c0_i32_85 = arith.constant 0 : i32
      %173 = tpu.memref_slice %arg6[%170, %c0_i32_85] : memref<16x128xf32, #tpu.memory_space<vmem>> -> memref<1x128xf32, #tpu.memory_space<vmem>>
      %174 = tpu.memref_squeeze %173 : memref<1x128xf32, #tpu.memory_space<vmem>> -> memref<128xf32, #tpu.memory_space<vmem>>
      %175 = tpu.memref_slice %arg7[%85] : memref<2x!tpu.dma_semaphore, #tpu.memory_space<semaphore_mem>> -> memref<1x!tpu.dma_semaphore, #tpu.memory_space<semaphore_mem>>
      %176 = tpu.memref_squeeze %175 : memref<1x!tpu.dma_semaphore, #tpu.memory_space<semaphore_mem>> -> memref<!tpu.dma_semaphore, #tpu.memory_space<semaphore_mem>>
      tpu.enqueue_dma source(%172 : memref<128xf32, #tpu.memory_space<any>>) target(%174 : memref<128xf32, #tpu.memory_space<vmem>>) target_semaphore(%176 : memref<!tpu.dma_semaphore, #tpu.memory_space<semaphore_mem>>)
    } else {
    }
    %c8_i32 = arith.constant 8 : i32
    %8 = arith.muli %0, %c8_i32 : i32
    %c0_i32_3 = arith.constant 0 : i32
    %9 = arith.addi %8, %c0_i32_3 : i32
    %c0_i32_4 = arith.constant 0 : i32
    %c0_i32_5 = arith.constant 0 : i32
    %10 = tpu.memref_slice %arg3[%c0_i32_4, %c0_i32_5] : memref<32x128xf32, #tpu.memory_space<any>> -> memref<1x128xf32, #tpu.memory_space<any>>
    %11 = tpu.memref_squeeze %10 : memref<1x128xf32, #tpu.memory_space<any>> -> memref<128xf32, #tpu.memory_space<any>>
    %c0_i32_6 = arith.constant 0 : i32
    %12 = tpu.memref_slice %arg6[%9, %c0_i32_6] : memref<16x128xf32, #tpu.memory_space<vmem>> -> memref<1x128xf32, #tpu.memory_space<vmem>>
    %13 = tpu.memref_squeeze %12 : memref<1x128xf32, #tpu.memory_space<vmem>> -> memref<128xf32, #tpu.memory_space<vmem>>
    %14 = tpu.memref_slice %arg7[%0] : memref<2x!tpu.dma_semaphore, #tpu.memory_space<semaphore_mem>> -> memref<1x!tpu.dma_semaphore, #tpu.memory_space<semaphore_mem>>
    %15 = tpu.memref_squeeze %14 : memref<1x!tpu.dma_semaphore, #tpu.memory_space<semaphore_mem>> -> memref<!tpu.dma_semaphore, #tpu.memory_space<semaphore_mem>>
    tpu.wait_dma2 semaphore(%15 : memref<!tpu.dma_semaphore, #tpu.memory_space<semaphore_mem>>) src(%11 : memref<128xf32, #tpu.memory_space<any>>) dst(%13 : memref<128xf32, #tpu.memory_space<vmem>>)
    %c8_i32_7 = arith.constant 8 : i32
    %16 = arith.muli %0, %c8_i32_7 : i32
    %c1_i32_8 = arith.constant 1 : i32
    %17 = arith.addi %16, %c1_i32_8 : i32
    %c0_i32_9 = arith.constant 0 : i32
    %c0_i32_10 = arith.constant 0 : i32
    %18 = tpu.memref_slice %arg3[%c0_i32_9, %c0_i32_10] : memref<32x128xf32, #tpu.memory_space<any>> -> memref<1x128xf32, #tpu.memory_space<any>>
    %19 = tpu.memref_squeeze %18 : memref<1x128xf32, #tpu.memory_space<any>> -> memref<128xf32, #tpu.memory_space<any>>
    %c0_i32_11 = arith.constant 0 : i32
    %20 = tpu.memref_slice %arg6[%17, %c0_i32_11] : memref<16x128xf32, #tpu.memory_space<vmem>> -> memref<1x128xf32, #tpu.memory_space<vmem>>
    %21 = tpu.memref_squeeze %20 : memref<1x128xf32, #tpu.memory_space<vmem>> -> memref<128xf32, #tpu.memory_space<vmem>>
    %22 = tpu.memref_slice %arg7[%0] : memref<2x!tpu.dma_semaphore, #tpu.memory_space<semaphore_mem>> -> memref<1x!tpu.dma_semaphore, #tpu.memory_space<semaphore_mem>>
    %23 = tpu.memref_squeeze %22 : memref<1x!tpu.dma_semaphore, #tpu.memory_space<semaphore_mem>> -> memref<!tpu.dma_semaphore, #tpu.memory_space<semaphore_mem>>
    tpu.wait_dma2 semaphore(%23 : memref<!tpu.dma_semaphore, #tpu.memory_space<semaphore_mem>>) src(%19 : memref<128xf32, #tpu.memory_space<any>>) dst(%21 : memref<128xf32, #tpu.memory_space<vmem>>)
    %c8_i32_12 = arith.constant 8 : i32
    %24 = arith.muli %0, %c8_i32_12 : i32
    %c2_i32_13 = arith.constant 2 : i32
    %25 = arith.addi %24, %c2_i32_13 : i32
    %c0_i32_14 = arith.constant 0 : i32
    %c0_i32_15 = arith.constant 0 : i32
    %26 = tpu.memref_slice %arg3[%c0_i32_14, %c0_i32_15] : memref<32x128xf32, #tpu.memory_space<any>> -> memref<1x128xf32, #tpu.memory_space<any>>
    %27 = tpu.memref_squeeze %26 : memref<1x128xf32, #tpu.memory_space<any>> -> memref<128xf32, #tpu.memory_space<any>>
    %c0_i32_16 = arith.constant 0 : i32
    %28 = tpu.memref_slice %arg6[%25, %c0_i32_16] : memref<16x128xf32, #tpu.memory_space<vmem>> -> memref<1x128xf32, #tpu.memory_space<vmem>>
    %29 = tpu.memref_squeeze %28 : memref<1x128xf32, #tpu.memory_space<vmem>> -> memref<128xf32, #tpu.memory_space<vmem>>
    %30 = tpu.memref_slice %arg7[%0] : memref<2x!tpu.dma_semaphore, #tpu.memory_space<semaphore_mem>> -> memref<1x!tpu.dma_semaphore, #tpu.memory_space<semaphore_mem>>
    %31 = tpu.memref_squeeze %30 : memref<1x!tpu.dma_semaphore, #tpu.memory_space<semaphore_mem>> -> memref<!tpu.dma_semaphore, #tpu.memory_space<semaphore_mem>>
    tpu.wait_dma2 semaphore(%31 : memref<!tpu.dma_semaphore, #tpu.memory_space<semaphore_mem>>) src(%27 : memref<128xf32, #tpu.memory_space<any>>) dst(%29 : memref<128xf32, #tpu.memory_space<vmem>>)
    %c8_i32_17 = arith.constant 8 : i32
    %32 = arith.muli %0, %c8_i32_17 : i32
    %c3_i32 = arith.constant 3 : i32
    %33 = arith.addi %32, %c3_i32 : i32
    %c0_i32_18 = arith.constant 0 : i32
    %c0_i32_19 = arith.constant 0 : i32
    %34 = tpu.memref_slice %arg3[%c0_i32_18, %c0_i32_19] : memref<32x128xf32, #tpu.memory_space<any>> -> memref<1x128xf32, #tpu.memory_space<any>>
    %35 = tpu.memref_squeeze %34 : memref<1x128xf32, #tpu.memory_space<any>> -> memref<128xf32, #tpu.memory_space<any>>
    %c0_i32_20 = arith.constant 0 : i32
    %36 = tpu.memref_slice %arg6[%33, %c0_i32_20] : memref<16x128xf32, #tpu.memory_space<vmem>> -> memref<1x128xf32, #tpu.memory_space<vmem>>
    %37 = tpu.memref_squeeze %36 : memref<1x128xf32, #tpu.memory_space<vmem>> -> memref<128xf32, #tpu.memory_space<vmem>>
    %38 = tpu.memref_slice %arg7[%0] : memref<2x!tpu.dma_semaphore, #tpu.memory_space<semaphore_mem>> -> memref<1x!tpu.dma_semaphore, #tpu.memory_space<semaphore_mem>>
    %39 = tpu.memref_squeeze %38 : memref<1x!tpu.dma_semaphore, #tpu.memory_space<semaphore_mem>> -> memref<!tpu.dma_semaphore, #tpu.memory_space<semaphore_mem>>
    tpu.wait_dma2 semaphore(%39 : memref<!tpu.dma_semaphore, #tpu.memory_space<semaphore_mem>>) src(%35 : memref<128xf32, #tpu.memory_space<any>>) dst(%37 : memref<128xf32, #tpu.memory_space<vmem>>)
    %c8_i32_21 = arith.constant 8 : i32
    %40 = arith.muli %0, %c8_i32_21 : i32
    %c4_i32 = arith.constant 4 : i32
    %41 = arith.addi %40, %c4_i32 : i32
    %c0_i32_22 = arith.constant 0 : i32
    %c0_i32_23 = arith.constant 0 : i32
    %42 = tpu.memref_slice %arg3[%c0_i32_22, %c0_i32_23] : memref<32x128xf32, #tpu.memory_space<any>> -> memref<1x128xf32, #tpu.memory_space<any>>
    %43 = tpu.memref_squeeze %42 : memref<1x128xf32, #tpu.memory_space<any>> -> memref<128xf32, #tpu.memory_space<any>>
    %c0_i32_24 = arith.constant 0 : i32
    %44 = tpu.memref_slice %arg6[%41, %c0_i32_24] : memref<16x128xf32, #tpu.memory_space<vmem>> -> memref<1x128xf32, #tpu.memory_space<vmem>>
    %45 = tpu.memref_squeeze %44 : memref<1x128xf32, #tpu.memory_space<vmem>> -> memref<128xf32, #tpu.memory_space<vmem>>
    %46 = tpu.memref_slice %arg7[%0] : memref<2x!tpu.dma_semaphore, #tpu.memory_space<semaphore_mem>> -> memref<1x!tpu.dma_semaphore, #tpu.memory_space<semaphore_mem>>
    %47 = tpu.memref_squeeze %46 : memref<1x!tpu.dma_semaphore, #tpu.memory_space<semaphore_mem>> -> memref<!tpu.dma_semaphore, #tpu.memory_space<semaphore_mem>>
    tpu.wait_dma2 semaphore(%47 : memref<!tpu.dma_semaphore, #tpu.memory_space<semaphore_mem>>) src(%43 : memref<128xf32, #tpu.memory_space<any>>) dst(%45 : memref<128xf32, #tpu.memory_space<vmem>>)
    %c8_i32_25 = arith.constant 8 : i32
    %48 = arith.muli %0, %c8_i32_25 : i32
    %c5_i32 = arith.constant 5 : i32
    %49 = arith.addi %48, %c5_i32 : i32
    %c0_i32_26 = arith.constant 0 : i32
    %c0_i32_27 = arith.constant 0 : i32
    %50 = tpu.memref_slice %arg3[%c0_i32_26, %c0_i32_27] : memref<32x128xf32, #tpu.memory_space<any>> -> memref<1x128xf32, #tpu.memory_space<any>>
    %51 = tpu.memref_squeeze %50 : memref<1x128xf32, #tpu.memory_space<any>> -> memref<128xf32, #tpu.memory_space<any>>
    %c0_i32_28 = arith.constant 0 : i32
    %52 = tpu.memref_slice %arg6[%49, %c0_i32_28] : memref<16x128xf32, #tpu.memory_space<vmem>> -> memref<1x128xf32, #tpu.memory_space<vmem>>
    %53 = tpu.memref_squeeze %52 : memref<1x128xf32, #tpu.memory_space<vmem>> -> memref<128xf32, #tpu.memory_space<vmem>>
    %54 = tpu.memref_slice %arg7[%0] : memref<2x!tpu.dma_semaphore, #tpu.memory_space<semaphore_mem>> -> memref<1x!tpu.dma_semaphore, #tpu.memory_space<semaphore_mem>>
    %55 = tpu.memref_squeeze %54 : memref<1x!tpu.dma_semaphore, #tpu.memory_space<semaphore_mem>> -> memref<!tpu.dma_semaphore, #tpu.memory_space<semaphore_mem>>
    tpu.wait_dma2 semaphore(%55 : memref<!tpu.dma_semaphore, #tpu.memory_space<semaphore_mem>>) src(%51 : memref<128xf32, #tpu.memory_space<any>>) dst(%53 : memref<128xf32, #tpu.memory_space<vmem>>)
    %c8_i32_29 = arith.constant 8 : i32
    %56 = arith.muli %0, %c8_i32_29 : i32
    %c6_i32 = arith.constant 6 : i32
    %57 = arith.addi %56, %c6_i32 : i32
    %c0_i32_30 = arith.constant 0 : i32
    %c0_i32_31 = arith.constant 0 : i32
    %58 = tpu.memref_slice %arg3[%c0_i32_30, %c0_i32_31] : memref<32x128xf32, #tpu.memory_space<any>> -> memref<1x128xf32, #tpu.memory_space<any>>
    %59 = tpu.memref_squeeze %58 : memref<1x128xf32, #tpu.memory_space<any>> -> memref<128xf32, #tpu.memory_space<any>>
    %c0_i32_32 = arith.constant 0 : i32
    %60 = tpu.memref_slice %arg6[%57, %c0_i32_32] : memref<16x128xf32, #tpu.memory_space<vmem>> -> memref<1x128xf32, #tpu.memory_space<vmem>>
    %61 = tpu.memref_squeeze %60 : memref<1x128xf32, #tpu.memory_space<vmem>> -> memref<128xf32, #tpu.memory_space<vmem>>
    %62 = tpu.memref_slice %arg7[%0] : memref<2x!tpu.dma_semaphore, #tpu.memory_space<semaphore_mem>> -> memref<1x!tpu.dma_semaphore, #tpu.memory_space<semaphore_mem>>
    %63 = tpu.memref_squeeze %62 : memref<1x!tpu.dma_semaphore, #tpu.memory_space<semaphore_mem>> -> memref<!tpu.dma_semaphore, #tpu.memory_space<semaphore_mem>>
    tpu.wait_dma2 semaphore(%63 : memref<!tpu.dma_semaphore, #tpu.memory_space<semaphore_mem>>) src(%59 : memref<128xf32, #tpu.memory_space<any>>) dst(%61 : memref<128xf32, #tpu.memory_space<vmem>>)
    %c8_i32_33 = arith.constant 8 : i32
    %64 = arith.muli %0, %c8_i32_33 : i32
    %c7_i32 = arith.constant 7 : i32
    %65 = arith.addi %64, %c7_i32 : i32
    %c0_i32_34 = arith.constant 0 : i32
    %c0_i32_35 = arith.constant 0 : i32
    %66 = tpu.memref_slice %arg3[%c0_i32_34, %c0_i32_35] : memref<32x128xf32, #tpu.memory_space<any>> -> memref<1x128xf32, #tpu.memory_space<any>>
    %67 = tpu.memref_squeeze %66 : memref<1x128xf32, #tpu.memory_space<any>> -> memref<128xf32, #tpu.memory_space<any>>
    %c0_i32_36 = arith.constant 0 : i32
    %68 = tpu.memref_slice %arg6[%65, %c0_i32_36] : memref<16x128xf32, #tpu.memory_space<vmem>> -> memref<1x128xf32, #tpu.memory_space<vmem>>
    %69 = tpu.memref_squeeze %68 : memref<1x128xf32, #tpu.memory_space<vmem>> -> memref<128xf32, #tpu.memory_space<vmem>>
    %70 = tpu.memref_slice %arg7[%0] : memref<2x!tpu.dma_semaphore, #tpu.memory_space<semaphore_mem>> -> memref<1x!tpu.dma_semaphore, #tpu.memory_space<semaphore_mem>>
    %71 = tpu.memref_squeeze %70 : memref<1x!tpu.dma_semaphore, #tpu.memory_space<semaphore_mem>> -> memref<!tpu.dma_semaphore, #tpu.memory_space<semaphore_mem>>
    tpu.wait_dma2 semaphore(%71 : memref<!tpu.dma_semaphore, #tpu.memory_space<semaphore_mem>>) src(%67 : memref<128xf32, #tpu.memory_space<any>>) dst(%69 : memref<128xf32, #tpu.memory_space<vmem>>)
    %c8_i32_37 = arith.constant 8 : i32
    %72 = arith.muli %0, %c8_i32_37 : i32
    %73 = tpu.assume_multiple %72, 8 : i32
    %c8_i32_38 = arith.constant 8 : i32
    %74 = arith.muli %arg1, %c8_i32_38 : i32
    %75 = tpu.assume_multiple %74, 8 : i32
    %76 = arith.index_cast %73 : i32 to index
    %c0 = arith.constant 0 : index
    %77 = vector.load %arg6[%76, %c0] : memref<16x128xf32, #tpu.memory_space<vmem>>, vector<8x128xf32>
    %78 = arith.index_cast %75 : i32 to index
    %c0_39 = arith.constant 0 : index
    %79 = vector.load %arg4[%78, %c0_39] : memref<16x128xf32, #tpu.memory_space<vmem>>, vector<8x128xf32>
    %80 = arith.addf %77, %79 : vector<8x128xf32>
    %c0_40 = arith.constant 0 : index
    %c0_41 = arith.constant 0 : index
    %c0_42 = arith.constant 0 : index
    %81 = vector.load %arg5[%c0_40, %c0_41, %c0_42] : memref<1x8x128xf32, #tpu.memory_space<vmem>>, vector<1x8x128xf32>
    %82 = vector.shape_cast %81 : vector<1x8x128xf32> to vector<8x128xf32>
    %83 = vector.shape_cast %80 : vector<8x128xf32> to vector<1x8x128xf32>
    tpu.vector_store %arg5[%c0_40, %c0_41, %c0_42], %83 {strides = array<i32>} : memref<1x8x128xf32, #tpu.memory_space<vmem>>, vector<1x8x128xf32>,
    return
  }
  func.func @transform_1(%arg0: i32, %arg1: i32, %arg2: memref<32xi32, #tpu.memory_space<smem>>) -> (i32, i32) {
    %c0_i32 = arith.constant 0 : i32
    %c0_i32_0 = arith.constant 0 : i32
    %c0_i32_1 = arith.constant 0 : i32
    return %c0_i32, %c0_i32_0 : i32, i32
  }
  func.func @transform_2(%arg0: i32, %arg1: i32, %arg2: memref<32xi32, #tpu.memory_space<smem>>) -> (i32, i32, i32) {
    %c0_i32 = arith.constant 0 : i32
    %c0_i32_0 = arith.constant 0 : i32
    return %arg0, %arg1, %c0_i32 : i32, i32, i32
  }
}

</mosaic_0001>

<llo_original>
// kernel: tpu_custom_call.1
$region0: #{tpu_custom_call.1}
  #allocation0 [shape = 'u32[]', space=smem, size = 0x4, offset = 0x4, fixed_abs, tag = 'smem constant byte address 0x4 - core index']
  #allocation1 [shape = 'u32[144,128]{1,0:T(1,128)}', space=vmem, size = 0x12000, scoped, tag = 'internal scratch']
  #allocation2 [shape = 'f32[16,128]{1,0:T(8,128)}', space=vmem, size = 0x2000, scoped, tag = 'scratch operand']
  #allocation3 [shape = 's32[2]{0}', space=sflag, size = 0x8, scoped, tag = 'scratch operand']
  #allocation4 [shape = 's32[1]{0}', space=sflag, size = 0x4, scoped, tag = 'scoped memory for tpu_custom_call.1']
  #allocation5 [shape = 'u8[512]{0}', space=smem, size = 0x200, scoped, tag = 'prefetched SMEM operand 0']
  #allocation10 [shape = 's32[]', space=sflag, size = 0x4, offset = 0, fixed_abs, tag = 'sflag constant byte address 0x0 - dummy sync flag']
  #allocation11 [shape = 's32[]', space=sflag, size = 0x4, offset = 0, fixed_abs, tag = 'sflag constant byte address 0x0 - dummy sync flag']
  #allocation12 [shape = 'u32[]', space=smem, size = 0x4, offset = 0x44, fixed_abs, tag = 'smem constant byte address 0x44 - assertion arg 0']
  #allocation13 [shape = 'u32[]', space=smem, size = 0x4, offset = 0x48, fixed_abs, tag = 'smem constant byte address 0x48 - assertion arg 1']
  #allocation14 [shape = 's32[]', space=sflag, size = 0x4, offset = 0, fixed_abs, tag = 'sflag constant byte address 0x0 - dummy sync flag']
  #allocation15 [shape = 's32[]', space=sflag, size = 0x4, offset = 0, fixed_abs, tag = 'sflag constant byte address 0x0 - dummy sync flag']
  #allocation16 [shape = 's32[]', space=sflag, size = 0x4, offset = 0, fixed_abs, tag = 'sflag constant byte address 0x0 - dummy sync flag']
  #allocation17 [shape = 's32[]', space=sflag, size = 0x4, offset = 0, fixed_abs, tag = 'sflag constant byte address 0x0 - dummy sync flag']
  #allocation18 [shape = 's32[]', space=sflag, size = 0x4, offset = 0, fixed_abs, tag = 'sflag constant byte address 0x0 - dummy sync flag']
  #allocation19 [shape = 's32[]', space=sflag, size = 0x4, offset = 0, fixed_abs, tag = 'sflag constant byte address 0x0 - dummy sync flag']
  #allocation20 [shape = 's32[]', space=sflag, size = 0x4, offset = 0, fixed_abs, tag = 'sflag constant byte address 0x0 - dummy sync flag']
  #allocation21 [shape = 's32[]', space=sflag, size = 0x4, offset = 0, fixed_abs, tag = 'sflag constant byte address 0x0 - dummy sync flag']
  #allocation22 [shape = 's32[]', space=sflag, size = 0x4, offset = 0, fixed_abs, tag = 'sflag constant byte address 0x0 - dummy sync flag']
  #allocation23 [shape = 's32[]', space=sflag, size = 0x4, offset = 0, fixed_abs, tag = 'sflag constant byte address 0x0 - dummy sync flag']
  #allocation24 [shape = 's32[]', space=sflag, size = 0x4, offset = 0, fixed_abs, tag = 'sflag constant byte address 0x0 - dummy sync flag']
  #allocation25 [shape = 's32[]', space=sflag, size = 0x4, offset = 0, fixed_abs, tag = 'sflag constant byte address 0x0 - dummy sync flag']
  #allocation26 [shape = 's32[]', space=sflag, size = 0x4, offset = 0, fixed_abs, tag = 'sflag constant byte address 0x0 - dummy sync flag']
  #allocation27 [shape = 's32[]', space=sflag, size = 0x4, offset = 0, fixed_abs, tag = 'sflag constant byte address 0x0 - dummy sync flag']
  #allocation28 [shape = 's32[]', space=sflag, size = 0x4, offset = 0, fixed_abs, tag = 'sflag constant byte address 0x0 - dummy sync flag']
  #allocation29 [shape = 's32[]', space=sflag, size = 0x4, offset = 0, fixed_abs, tag = 'sflag constant byte address 0x0 - dummy sync flag']
  #allocation30 [shape = 's32[]', space=sflag, size = 0x4, offset = 0, fixed_abs, tag = 'sflag constant byte address 0x0 - dummy sync flag']
  #allocation31 [shape = 's32[]', space=sflag, size = 0x4, offset = 0, fixed_abs, tag = 'sflag constant byte address 0x0 - dummy sync flag']
  #allocation32 [shape = 's32[]', space=sflag, size = 0x4, offset = 0, fixed_abs, tag = 'sflag constant byte address 0x0 - dummy sync flag']
  #allocation33 [shape = 's32[]', space=sflag, size = 0x4, offset = 0, fixed_abs, tag = 'sflag constant byte address 0x0 - dummy sync flag']
  #allocation34 [shape = 's32[]', space=sflag, size = 0x4, offset = 0, fixed_abs, tag = 'sflag constant byte address 0x0 - dummy sync flag']
  #allocation35 [shape = 's32[]', space=sflag, size = 0x4, offset = 0, fixed_abs, tag = 'sflag constant byte address 0x0 - dummy sync flag']
  #allocation36 [shape = 's32[]', space=sflag, size = 0x4, offset = 0, fixed_abs, tag = 'sflag constant byte address 0x0 - dummy sync flag']
  #allocation37 [shape = 's32[]', space=sflag, size = 0x4, offset = 0, fixed_abs, tag = 'sflag constant byte address 0x0 - dummy sync flag']
  #allocation38 [shape = 's32[]', space=sflag, size = 0x4, offset = 0, fixed_abs, tag = 'sflag constant byte address 0x0 - dummy sync flag']
  #allocation39 [shape = 's32[]', space=sflag, size = 0x4, offset = 0, fixed_abs, tag = 'sflag constant byte address 0x0 - dummy sync flag']
  #allocation40 [shape = 's32[]', space=sflag, size = 0x4, offset = 0, fixed_abs, tag = 'sflag constant byte address 0x0 - dummy sync flag']
  #allocation41 [shape = 's32[]', space=sflag, size = 0x4, offset = 0, fixed_abs, tag = 'sflag constant byte address 0x0 - dummy sync flag']
  #allocation42 [shape = 's32[]', space=sflag, size = 0x4, offset = 0, fixed_abs, tag = 'sflag constant byte address 0x0 - dummy sync flag']
  #allocation43 [shape = 's32[]', space=sflag, size = 0x4, offset = 0, fixed_abs, tag = 'sflag constant byte address 0x0 - dummy sync flag']
  %s0 = inlined_call_operand.hbm [shape: s32[32], index: 0, kind: input, shape index: {}]
  %s1 = inlined_call_operand.hbm [shape: f32[32,128], index: 1, kind: input, shape index: {}]
  %s2 = inlined_call_operand.hbm [shape: f32[16,128], index: 2, kind: input, shape index: {}]
  %s3 = inlined_call_operand.hbm [shape: f32[2,16,128], index: 3, kind: output, shape index: {}]
  %s4 = sld [smem:[#allocation0]]
  $region113: #{tpu_custom_call.1} parent=0
    _
  %s6 = ssub.s32 1, %s4
  %s7 = scalar_select 0, %s6, %s4
  %9 = dma.hbm_to_smem %s0, 16, [#allocation5], [#allocation4]
  %10 = dma.done [#allocation4], 16
  %11 = sfence
  $region1: #{tpu_custom_call.1} parent=0
    #allocation6 [shape = 'u8[8192]{0}', space=vmem, size = 0x2000, scoped, tag = 'input window, operand 2, single buffered']
    #allocation7 [shape = 's32[2]{0}', space=sflag, size = 0x8, scoped, tag = 'scoped memory for tpu_custom_call.1']
    #allocation8 [shape = 's32[2]{0}', space=sflag, size = 0x8, scoped, tag = 'scoped memory for tpu_custom_call.1']
    #allocation9 [shape = 'u8[8192]{0}', space=vmem, size = 0x2000, scoped, tag = 'output window, operand 0']
    %12 = vsyncpa [#allocation7], 0
    %13 = vsyncpa [#allocation8], 0
    %s14 = scalar_lea.sflag [#allocation8], 1
    %15 = vsyncpa %s14, 0
    loop: start=0, step=1, limit=6
    $region2: #{tpu_custom_call.1} parent=1 // loop_pre_header
      _
    $region3: #{tpu_custom_call.1} parent=1 // loop_header
      %s17 = sphi 0, %s21
      %p18 = scmp.ge.s32.totalorder %s17, 6
      %s24 = sphi 0, %s36
      %s25 = sphi 0, %s32
      %s26 = sphi 0, %s24
      %s27 = sphi 0, %s25
      %s28 = sphi 0, %s26
      %s29 = sphi 0, %s27
      %s37 = sphi 0, %s37
      %s39 = sphi 0, %s37
      %s40 = sphi 0, %s39
      %s54 = sphi 0, %s40
      %s62 = sphi 0, %s64
      %s65 = sphi 0, %s62
      %s66 = sphi 0, %s65
      %s82 = sphi 0, %s66
    $region4: #{tpu_custom_call.1} parent=1 // loop_header_branch
      %20 = sbr.rel (%p18) target = $region8
    $region5: #{tpu_custom_call.1} parent=1 // loop_body
      %s22 = ssub.s32 %s17, 1
      %s23 = ssub.s32 %s17, 2
      %s30 = sadd.s32 1, %s25
      %p31 = scmp.ge.s32.totalorder %s30, 2
      %s32 = scalar_select %p31, 0, %s30
      %s33 = sadd.s32 1, %s24
      %s34 = scalar_select %p31, %s33, %s24
      %p35 = scmp.ge.s32.totalorder %s34, 2
      %s36 = scalar_select %p35, 0, %s34
      %s38 = sadd.s32 %s37, 1
      %p41 = scmp.eq.s32.totalorder %s17, 3
      %p42 = scmp.ne.s32.totalorder %s37, %s39
      %p43 = scmp.eq.s32.totalorder %s17, 0
      %p44 = por %p42, %p43
      %p45 = scmp.ne.s32.totalorder %s37, %s39
      %p46 = scmp.eq.s32.totalorder %s22, 3
      %p47 = por %p45, %p46
      %p48 = scmp.ne.s32.totalorder %s39, %s40
      %p49 = scmp.eq.s32.totalorder %s22, 0
      %p50 = por %p48, %p49
      %p51 = scmp.ne.s32.totalorder %s39, %s40
      %p52 = scmp.eq.s32.totalorder %s23, 3
      %p53 = por %p51, %p52
      %p55 = scmp.ne.s32.totalorder %s40, %s54
      %p56 = scmp.eq.s32.totalorder %s23, 0
      %p57 = por %p55, %p56
      %s58 = ssub.s32 %s24, %s36
      %s59 = ssub.s32 %s25, %s32
      %s60 = sor.u32 %s58, %s59
      %p61 = scmp.eq.s32.totalorder %s60, 0
      %s63 = sadd.s32 %s62, 1
      %s64 = scalar_select %p61, %s62, %s63
      %p67 = pneg %p61
      %p68 = scmp.eq.s32.totalorder %s17, 3
      %p69 = por %p67, %p68
      %p70 = scmp.ne.s32.totalorder %s62, %s65
      %p71 = scmp.eq.s32.totalorder %s17, 0
      %p72 = por %p70, %p71
      %p73 = scmp.ne.s32.totalorder %s62, %s65
      %p74 = scmp.eq.s32.totalorder %s22, 3
      %p75 = por %p73, %p74
      %p76 = scmp.ne.s32.totalorder %s65, %s66
      %p77 = scmp.eq.s32.totalorder %s22, 0
      %p78 = por %p76, %p77
      %p79 = scmp.ne.s32.totalorder %s65, %s66
      %p80 = scmp.eq.s32.totalorder %s23, 3
      %p81 = por %p79, %p80
      %p83 = scmp.ne.s32.totalorder %s66, %s82
      %p84 = scmp.eq.s32.totalorder %s23, 0
      %p85 = por %p83, %p84
      %p86 = scmp.le.s32.totalorder 1, %s17
      %p87 = scmp.lt.s32.totalorder %s17, 5
      %p88 = pnand %p86, %p87
      %p89 = pneg %p88
      // Predicated region
      $region9: #{tpu_custom_call.1} parent=5 // pred_check
        _
      $region10: #{tpu_custom_call.1} parent=5 // pred_check_branch
        %91 = sbr.rel (%p88) target = $region12
      $region11: #{tpu_custom_call.1} parent=5 // pred_region
        %s92 = ssub.s32 %s17, 1
        // Predicated region
        $region13: #{tpu_custom_call.1} parent=11 // pred_check
          %p93 = pneg %p50
        $region14: #{tpu_custom_call.1} parent=11 // pred_check_branch
          %95 = sbr.rel (%p93) target = $region16
        $region15: #{tpu_custom_call.1} parent=11 // pred_region
          %s97 = ssub.s32 256, 256
          %98 = vsyncadd [#allocation7], %s97
          %s99 = sshll.u32 [#allocation6], 4
          %s100 = int_to_ptr.vmem [resolvable:$true] %s99
          %105 = dma.hbm_to_vmem [thread:$0]  %s2, 256, %s100, [#allocation7], 128, 128, 8
        $region16: #{tpu_custom_call.1} parent=11 // pred_fallthru
          _
      $region12: #{tpu_custom_call.1} parent=5 // pred_fallthru
        _
      %p106 = scmp.lt.s32.totalorder %s17, 4
      // Predicated region
      $region17: #{tpu_custom_call.1} parent=5 // pred_check
        %p107 = pneg %p106
      $region18: #{tpu_custom_call.1} parent=5 // pred_check_branch
        %109 = sbr.rel (%p107) target = $region20
      $region19: #{tpu_custom_call.1} parent=5 // pred_region
        _
      $region20: #{tpu_custom_call.1} parent=5 // pred_fallthru
        _
      %p110 = scmp.le.s32.totalorder 1, %s17
      %p111 = scmp.lt.s32.totalorder %s17, 5
      %p112 = pnand %p110, %p111
      %p113 = pneg %p112
      // Predicated region
      $region21: #{tpu_custom_call.1} parent=5 // pred_check
        _
      $region22: #{tpu_custom_call.1} parent=5 // pred_check_branch
        %115 = sbr.rel (%p112) target = $region24
      $region23: #{tpu_custom_call.1} parent=5 // pred_region
        %s116 = ssub.s32 %s17, 1
        // Predicated region
        $region25: #{tpu_custom_call.1} parent=23 // pred_check
          %p117 = pneg %p50
        $region26: #{tpu_custom_call.1} parent=23 // pred_check_branch
          %119 = sbr.rel (%p117) target = $region28
        $region27: #{tpu_custom_call.1} parent=23 // pred_region
          %120 = dma.done [#allocation7], 256
        $region28: #{tpu_custom_call.1} parent=23 // pred_fallthru
          _
        %p121 = pneg %p50
        %p122 = pneg %p47
        %p123 = pneg %p78
        %p124 = pneg %p75
        %s125 = sand.u32 %s65, 1
        %s126 = scalar_lea.sflag [#allocation8], %s125
        %s127 = sand.u32 %s65, 1
        %s128 = smul.addr %s127, 8
        %s129 = scalar_lea.vmem [#allocation9], %s128
        %s130 = sand.u32 %s27, 1
        %p131 = scmp.eq.s32.totalorder %s27, 0
        // Predicated region
        $region29: #{tpu_custom_call.1} parent=23 // pred_check
          %p132 = pneg %p131
        $region30: #{tpu_custom_call.1} parent=23 // pred_check_branch
          %134 = sbr.rel (%p132) target = $region32
        $region31: #{tpu_custom_call.1} parent=23 // pred_region
          %s135 = smul.u32 %s26, 16
          %s136 = sld [smem:[#allocation5 + %s135]]
          %s137 = smul.addr %s136, 16
          %s138 = scalar_lea.hbm %s1, %s137
          // Predicated region
          $region33: #{tpu_custom_call.1} parent=31 // pred_check
            _
          $region34: #{tpu_custom_call.1} parent=31 // pred_check_branch
            %140 = sbr.rel target = $region36
          $region35: #{tpu_custom_call.1} parent=31 // pred_region
            %141 = sst [smem:[#allocation12]] [#allocation11]
            %142 = sst [smem:[#allocation13]] [#allocation10]
          $region36: #{tpu_custom_call.1} parent=31 // pred_fallthru
            _
          %144 = shalt.err (0)
          %s146 = sshll.u32 [#allocation2], 4
          %s147 = int_to_ptr.vmem [resolvable:$true] %s146
          %149 = dma.hbm_to_vmem [thread:$0]  %s138, 16, %s147, [#allocation3]
          %s150 = sadd.s32 %s135, 1
          %s151 = sld [smem:[#allocation5 + %s150]]
          %s152 = smul.addr %s151, 16
          %s153 = scalar_lea.hbm %s1, %s152
          %s154 = scalar_lea.vmem [#allocation2], 1
          // Predicated region
          $region37: #{tpu_custom_call.1} parent=31 // pred_check
            _
          $region38: #{tpu_custom_call.1} parent=31 // pred_check_branch
            %156 = sbr.rel target = $region40
          $region39: #{tpu_custom_call.1} parent=31 // pred_region
            %157 = sst [smem:[#allocation12]] [#allocation15]
            %158 = sst [smem:[#allocation13]] [#allocation14]
          $region40: #{tpu_custom_call.1} parent=31 // pred_fallthru
            _
          %160 = shalt.err (0)
          %s162 = sshll.u32 %s154, 4
          %s163 = int_to_ptr.vmem [resolvable:$true] %s162
          %165 = dma.hbm_to_vmem [thread:$0]  %s153, 16, %s163, [#allocation3]
          %s166 = sadd.s32 %s135, 2
          %s167 = sld [smem:[#allocation5 + %s166]]
          %s168 = smul.addr %s167, 16
          %s169 = scalar_lea.hbm %s1, %s168
          %s170 = scalar_lea.vmem [#allocation2], 2
          // Predicated region
          $region41: #{tpu_custom_call.1} parent=31 // pred_check
            _
          $region42: #{tpu_custom_call.1} parent=31 // pred_check_branch
            %172 = sbr.rel target = $region44
          $region43: #{tpu_custom_call.1} parent=31 // pred_region
            %173 = sst [smem:[#allocation12]] [#allocation17]
            %174 = sst [smem:[#allocation13]] [#allocation16]
          $region44: #{tpu_custom_call.1} parent=31 // pred_fallthru
            _
          %176 = shalt.err (0)
          %s178 = sshll.u32 %s170, 4
          %s179 = int_to_ptr.vmem [resolvable:$true] %s178
          %181 = dma.hbm_to_vmem [thread:$0]  %s169, 16, %s179, [#allocation3]
          %s182 = sadd.s32 %s135, 3
          %s183 = sld [smem:[#allocation5 + %s182]]
          %s184 = smul.addr %s183, 16
          %s185 = scalar_lea.hbm %s1, %s184
          %s186 = scalar_lea.vmem [#allocation2], 3
          // Predicated region
          $region45: #{tpu_custom_call.1} parent=31 // pred_check
            _
          $region46: #{tpu_custom_call.1} parent=31 // pred_check_branch
            %188 = sbr.rel target = $region48
          $region47: #{tpu_custom_call.1} parent=31 // pred_region
            %189 = sst [smem:[#allocation12]] [#allocation19]
            %190 = sst [smem:[#allocation13]] [#allocation18]
          $region48: #{tpu_custom_call.1} parent=31 // pred_fallthru
            _
          %192 = shalt.err (0)
          %s194 = sshll.u32 %s186, 4
          %s195 = int_to_ptr.vmem [resolvable:$true] %s194
          %197 = dma.hbm_to_vmem [thread:$0]  %s185, 16, %s195, [#allocation3]
          %s198 = sadd.s32 %s135, 4
          %s199 = sld [smem:[#allocation5 + %s198]]
          %s200 = smul.addr %s199, 16
          %s201 = scalar_lea.hbm %s1, %s200
          %s202 = scalar_lea.vmem [#allocation2], 4
          // Predicated region
          $region49: #{tpu_custom_call.1} parent=31 // pred_check
            _
          $region50: #{tpu_custom_call.1} parent=31 // pred_check_branch
            %204 = sbr.rel target = $region52
          $region51: #{tpu_custom_call.1} parent=31 // pred_region
            %205 = sst [smem:[#allocation12]] [#allocation21]
            %206 = sst [smem:[#allocation13]] [#allocation20]
          $region52: #{tpu_custom_call.1} parent=31 // pred_fallthru
            _
          %208 = shalt.err (0)
          %s210 = sshll.u32 %s202, 4
          %s211 = int_to_ptr.vmem [resolvable:$true] %s210
          %213 = dma.hbm_to_vmem [thread:$0]  %s201, 16, %s211, [#allocation3]
          %s214 = sadd.s32 %s135, 5
          %s215 = sld [smem:[#allocation5 + %s214]]
          %s216 = smul.addr %s215, 16
          %s217 = scalar_lea.hbm %s1, %s216
          %s218 = scalar_lea.vmem [#allocation2], 5
          // Predicated region
          $region53: #{tpu_custom_call.1} parent=31 // pred_check
            _
          $region54: #{tpu_custom_call.1} parent=31 // pred_check_branch
            %220 = sbr.rel target = $region56
          $region55: #{tpu_custom_call.1} parent=31 // pred_region
            %221 = sst [smem:[#allocation12]] [#allocation23]
            %222 = sst [smem:[#allocation13]] [#allocation22]
          $region56: #{tpu_custom_call.1} parent=31 // pred_fallthru
            _
          %224 = shalt.err (0)
          %s226 = sshll.u32 %s218, 4
          %s227 = int_to_ptr.vmem [resolvable:$true] %s226
          %229 = dma.hbm_to_vmem [thread:$0]  %s217, 16, %s227, [#allocation3]
          %s230 = sadd.s32 %s135, 6
          %s231 = sld [smem:[#allocation5 + %s230]]
          %s232 = smul.addr %s231, 16
          %s233 = scalar_lea.hbm %s1, %s232
          %s234 = scalar_lea.vmem [#allocation2], 6
          // Predicated region
          $region57: #{tpu_custom_call.1} parent=31 // pred_check
            _
          $region58: #{tpu_custom_call.1} parent=31 // pred_check_branch
            %236 = sbr.rel target = $region60
          $region59: #{tpu_custom_call.1} parent=31 // pred_region
            %237 = sst [smem:[#allocation12]] [#allocation25]
            %238 = sst [smem:[#allocation13]] [#allocation24]
          $region60: #{tpu_custom_call.1} parent=31 // pred_fallthru
            _
          %240 = shalt.err (0)
          %s242 = sshll.u32 %s234, 4
          %s243 = int_to_ptr.vmem [resolvable:$true] %s242
          %245 = dma.hbm_to_vmem [thread:$0]  %s233, 16, %s243, [#allocation3]
          %s246 = sadd.s32 %s135, 7
          %s247 = sld [smem:[#allocation5 + %s246]]
          %s248 = smul.addr %s247, 16
          %s249 = scalar_lea.hbm %s1, %s248
          %s250 = scalar_lea.vmem [#allocation2], 7
          // Predicated region
          $region61: #{tpu_custom_call.1} parent=31 // pred_check
            _
          $region62: #{tpu_custom_call.1} parent=31 // pred_check_branch
            %252 = sbr.rel target = $region64
          $region63: #{tpu_custom_call.1} parent=31 // pred_region
            %253 = sst [smem:[#allocation12]] [#allocation27]
            %254 = sst [smem:[#allocation13]] [#allocation26]
          $region64: #{tpu_custom_call.1} parent=31 // pred_fallthru
            _
          %256 = shalt.err (0)
          %s258 = sshll.u32 %s250, 4
          %s259 = int_to_ptr.vmem [resolvable:$true] %s258
          %261 = dma.hbm_to_vmem [thread:$0]  %s249, 16, %s259, [#allocation3]
        $region32: #{tpu_custom_call.1} parent=23 // pred_fallthru
          _
        %s262 = sadd.s32 %s27, 1
        %p263 = scmp.lt.s32.totalorder %s262, 2
        // Predicated region
        $region65: #{tpu_custom_call.1} parent=23 // pred_check
          %p264 = pneg %p263
        $region66: #{tpu_custom_call.1} parent=23 // pred_check_branch
          %266 = sbr.rel (%p264) target = $region68
        $region67: #{tpu_custom_call.1} parent=23 // pred_region
          %s267 = ssub.s32 1, %s130
          %s268 = smul.u32 %s26, 16
          %s269 = smul.u32 %s262, 8
          %s270 = sadd.s32 %s268, %s269
          %s271 = sld [smem:[#allocation5 + %s270]]
          %s272 = smul.u32 %s267, 8
          %s273 = smul.addr %s271, 16
          %s274 = scalar_lea.hbm %s1, %s273
          %s275 = scalar_lea.vmem [#allocation2], %s272
          %s276 = scalar_lea.sflag [#allocation3], %s267
          // Predicated region
          $region69: #{tpu_custom_call.1} parent=67 // pred_check
            _
          $region70: #{tpu_custom_call.1} parent=67 // pred_check_branch
            %278 = sbr.rel target = $region72
          $region71: #{tpu_custom_call.1} parent=67 // pred_region
            %279 = sst [smem:[#allocation12]] [#allocation29]
            %280 = sst [smem:[#allocation13]] [#allocation28]
          $region72: #{tpu_custom_call.1} parent=67 // pred_fallthru
            _
          %282 = shalt.err (0)
          %s284 = sshll.u32 %s275, 4
          %s285 = int_to_ptr.vmem [resolvable:$true] %s284
          %287 = dma.hbm_to_vmem [thread:$0]  %s274, 16, %s285, %s276
          %s288 = sadd.s32 %s270, 1
          %s289 = sld [smem:[#allocation5 + %s288]]
          %s290 = sadd.s32 %s272, 1
          %s291 = smul.addr %s289, 16
          %s292 = scalar_lea.hbm %s1, %s291
          %s293 = scalar_lea.vmem [#allocation2], %s290
          // Predicated region
          $region73: #{tpu_custom_call.1} parent=67 // pred_check
            _
          $region74: #{tpu_custom_call.1} parent=67 // pred_check_branch
            %295 = sbr.rel target = $region76
          $region75: #{tpu_custom_call.1} parent=67 // pred_region
            %296 = sst [smem:[#allocation12]] [#allocation31]
            %297 = sst [smem:[#allocation13]] [#allocation30]
          $region76: #{tpu_custom_call.1} parent=67 // pred_fallthru
            _
          %299 = shalt.err (0)
          %s301 = sshll.u32 %s293, 4
          %s302 = int_to_ptr.vmem [resolvable:$true] %s301
          %304 = dma.hbm_to_vmem [thread:$0]  %s292, 16, %s302, %s276
          %s305 = sadd.s32 %s270, 2
          %s306 = sld [smem:[#allocation5 + %s305]]
          %s307 = sadd.s32 %s272, 2
          %s308 = smul.addr %s306, 16
          %s309 = scalar_lea.hbm %s1, %s308
          %s310 = scalar_lea.vmem [#allocation2], %s307
          // Predicated region
          $region77: #{tpu_custom_call.1} parent=67 // pred_check
            _
          $region78: #{tpu_custom_call.1} parent=67 // pred_check_branch
            %312 = sbr.rel target = $region80
          $region79: #{tpu_custom_call.1} parent=67 // pred_region
            %313 = sst [smem:[#allocation12]] [#allocation33]
            %314 = sst [smem:[#allocation13]] [#allocation32]
          $region80: #{tpu_custom_call.1} parent=67 // pred_fallthru
            _
          %316 = shalt.err (0)
          %s318 = sshll.u32 %s310, 4
          %s319 = int_to_ptr.vmem [resolvable:$true] %s318
          %321 = dma.hbm_to_vmem [thread:$0]  %s309, 16, %s319, %s276
          %s322 = sadd.s32 %s270, 3
          %s323 = sld [smem:[#allocation5 + %s322]]
          %s324 = sadd.s32 %s272, 3
          %s325 = smul.addr %s323, 16
          %s326 = scalar_lea.hbm %s1, %s325
          %s327 = scalar_lea.vmem [#allocation2], %s324
          // Predicated region
          $region81: #{tpu_custom_call.1} parent=67 // pred_check
            _
          $region82: #{tpu_custom_call.1} parent=67 // pred_check_branch
            %329 = sbr.rel target = $region84
          $region83: #{tpu_custom_call.1} parent=67 // pred_region
            %330 = sst [smem:[#allocation12]] [#allocation35]
            %331 = sst [smem:[#allocation13]] [#allocation34]
          $region84: #{tpu_custom_call.1} parent=67 // pred_fallthru
            _
          %333 = shalt.err (0)
          %s335 = sshll.u32 %s327, 4
          %s336 = int_to_ptr.vmem [resolvable:$true] %s335
          %338 = dma.hbm_to_vmem [thread:$0]  %s326, 16, %s336, %s276
          %s339 = sadd.s32 %s270, 4
          %s340 = sld [smem:[#allocation5 + %s339]]
          %s341 = sadd.s32 %s272, 4
          %s342 = smul.addr %s340, 16
          %s343 = scalar_lea.hbm %s1, %s342
          %s344 = scalar_lea.vmem [#allocation2], %s341
          // Predicated region
          $region85: #{tpu_custom_call.1} parent=67 // pred_check
            _
          $region86: #{tpu_custom_call.1} parent=67 // pred_check_branch
            %346 = sbr.rel target = $region88
          $region87: #{tpu_custom_call.1} parent=67 // pred_region
            %347 = sst [smem:[#allocation12]] [#allocation37]
            %348 = sst [smem:[#allocation13]] [#allocation36]
          $region88: #{tpu_custom_call.1} parent=67 // pred_fallthru
            _
          %350 = shalt.err (0)
          %s352 = sshll.u32 %s344, 4
          %s353 = int_to_ptr.vmem [resolvable:$true] %s352
          %355 = dma.hbm_to_vmem [thread:$0]  %s343, 16, %s353, %s276
          %s356 = sadd.s32 %s270, 5
          %s357 = sld [smem:[#allocation5 + %s356]]
          %s358 = sadd.s32 %s272, 5
          %s359 = smul.addr %s357, 16
          %s360 = scalar_lea.hbm %s1, %s359
          %s361 = scalar_lea.vmem [#allocation2], %s358
          // Predicated region
          $region89: #{tpu_custom_call.1} parent=67 // pred_check
            _
          $region90: #{tpu_custom_call.1} parent=67 // pred_check_branch
            %363 = sbr.rel target = $region92
          $region91: #{tpu_custom_call.1} parent=67 // pred_region
            %364 = sst [smem:[#allocation12]] [#allocation39]
            %365 = sst [smem:[#allocation13]] [#allocation38]
          $region92: #{tpu_custom_call.1} parent=67 // pred_fallthru
            _
          %367 = shalt.err (0)
          %s369 = sshll.u32 %s361, 4
          %s370 = int_to_ptr.vmem [resolvable:$true] %s369
          %372 = dma.hbm_to_vmem [thread:$0]  %s360, 16, %s370, %s276
          %s373 = sadd.s32 %s270, 6
          %s374 = sld [smem:[#allocation5 + %s373]]
          %s375 = sadd.s32 %s272, 6
          %s376 = smul.addr %s374, 16
          %s377 = scalar_lea.hbm %s1, %s376
          %s378 = scalar_lea.vmem [#allocation2], %s375
          // Predicated region
          $region93: #{tpu_custom_call.1} parent=67 // pred_check
            _
          $region94: #{tpu_custom_call.1} parent=67 // pred_check_branch
            %380 = sbr.rel target = $region96
          $region95: #{tpu_custom_call.1} parent=67 // pred_region
            %381 = sst [smem:[#allocation12]] [#allocation41]
            %382 = sst [smem:[#allocation13]] [#allocation40]
          $region96: #{tpu_custom_call.1} parent=67 // pred_fallthru
            _
          %384 = shalt.err (0)
          %s386 = sshll.u32 %s378, 4
          %s387 = int_to_ptr.vmem [resolvable:$true] %s386
          %389 = dma.hbm_to_vmem [thread:$0]  %s377, 16, %s387, %s276
          %s390 = sadd.s32 %s270, 7
          %s391 = sld [smem:[#allocation5 + %s390]]
          %s392 = sadd.s32 %s272, 7
          %s393 = smul.addr %s391, 16
          %s394 = scalar_lea.hbm %s1, %s393
          %s395 = scalar_lea.vmem [#allocation2], %s392
          // Predicated region
          $region97: #{tpu_custom_call.1} parent=67 // pred_check
            _
          $region98: #{tpu_custom_call.1} parent=67 // pred_check_branch
            %397 = sbr.rel target = $region100
          $region99: #{tpu_custom_call.1} parent=67 // pred_region
            %398 = sst [smem:[#allocation12]] [#allocation43]
            %399 = sst [smem:[#allocation13]] [#allocation42]
          $region100: #{tpu_custom_call.1} parent=67 // pred_fallthru
            _
          %401 = shalt.err (0)
          %s403 = sshll.u32 %s395, 4
          %s404 = int_to_ptr.vmem [resolvable:$true] %s403
          %406 = dma.hbm_to_vmem [thread:$0]  %s394, 16, %s404, %s276
        $region68: #{tpu_custom_call.1} parent=23 // pred_fallthru
          _
        %s407 = smul.u32 %s130, 8
        %s408 = scalar_lea.sflag [#allocation3], %s130
        %410 = dma.done %s408, 16
        %412 = dma.done %s408, 16
        %414 = dma.done %s408, 16
        %416 = dma.done %s408, 16
        %418 = dma.done %s408, 16
        %420 = dma.done %s408, 16
        %422 = dma.done %s408, 16
        %424 = dma.done %s408, 16
        %s425 = smul.u32 %s27, 8
        %s426 = scalar_lea.vmem [#allocation2], %s407
        %v427 = vld [vmem:[%s426] sm:$0xff]
        %s428 = scalar_lea.vmem [#allocation6], %s425
        %v429 = vld [vmem:[%s428] sm:$0xff]
        %v430 = vadd.f32 %v427, %v429
        %431 = vst [vmem:[%s129] sm:$0xff] %v430
        %s432 = sand.u32 %s65, 1
        %s433 = scalar_lea.sflag [#allocation8], %s432
        %s434 = sand.u32 %s65, 1
        %s435 = smul.addr %s434, 8
        %s436 = scalar_lea.vmem [#allocation9], %s435
        // Predicated region
        $region101: #{tpu_custom_call.1} parent=23 // pred_check
          %p437 = pneg %p75
        $region102: #{tpu_custom_call.1} parent=23 // pred_check_branch
          %439 = sbr.rel (%p437) target = $region104
        $region103: #{tpu_custom_call.1} parent=23 // pred_region
          %s441 = ssub.s32 128, 128
          %442 = vsyncadd %s433, %s441
          %s443 = smul.addr %s26, 2
          %s444 = sadd.s32 %s27, %s443
          %s445 = smul.addr %s444, 128
          %s446 = scalar_lea.hbm %s3, %s445
          %s448 = sshll.u32 %s436, 4
          %s449 = int_to_ptr.vmem [resolvable:$true] %s448
          %451 = dma.vmem_to_hbm [thread:$0]  %s449, 128, %s446, %s433
        $region104: #{tpu_custom_call.1} parent=23 // pred_fallthru
          _
      $region24: #{tpu_custom_call.1} parent=5 // pred_fallthru
        _
      %p452 = scmp.le.s32.totalorder 2, %s17
      // Predicated region
      $region105: #{tpu_custom_call.1} parent=5 // pred_check
        %p453 = pneg %p452
      $region106: #{tpu_custom_call.1} parent=5 // pred_check_branch
        %455 = sbr.rel (%p453) target = $region108
      $region107: #{tpu_custom_call.1} parent=5 // pred_region
        %s456 = ssub.s32 %s17, 2
        // Predicated region
        $region109: #{tpu_custom_call.1} parent=107 // pred_check
          %p457 = pneg %p81
        $region110: #{tpu_custom_call.1} parent=107 // pred_check_branch
          %459 = sbr.rel (%p457) target = $region112
        $region111: #{tpu_custom_call.1} parent=107 // pred_region
          %s460 = sand.u32 %s66, 1
          %s461 = scalar_lea.sflag [#allocation8], %s460
          %s462 = sand.u32 %s66, 1
          %s463 = smul.addr %s462, 8
          %s464 = scalar_lea.vmem [#allocation9], %s463
          %465 = dma.done %s461, 128
        $region112: #{tpu_custom_call.1} parent=107 // pred_fallthru
          _
      $region108: #{tpu_custom_call.1} parent=5 // pred_fallthru
        _
    $region6: #{tpu_custom_call.1} parent=1 // loop_footer
      %s21 = sadd.s32 1, %s17
    $region7: #{tpu_custom_call.1} parent=1 // loop_footer_branch
      %16 = sbr.rel target = $region3
    $region8: #{tpu_custom_call.1} parent=1 // loop_exit
      _
    %466 = vsyncpa [#allocation7], 1
    %s467 = scalar_lea.sflag [#allocation7], 1
    %468 = vsyncpa %s467, 1
    %469 = vsyncpa [#allocation8], 1
    %s470 = scalar_lea.sflag [#allocation8], 1
    %471 = vsyncpa %s470, 1
  %472 = vsyncmov [#allocation3]
  %s473 = vpop.sfrf %472
  %p474 = scmp.eq.s32.totalorder %s473, 0
  %p475 = pneg %p474
  %477 = shalt.err (%p475)
  %s478 = scalar_lea.sflag [#allocation3], 1
  %479 = vsyncmov %s478
  %s480 = vpop.sfrf %479
  %p481 = scmp.eq.s32.totalorder %s480, 0
  %p482 = pneg %p481
  %484 = shalt.err (%p482)

</llo_original>
